<compile_context>
chip_gen: v7x
topology: tpu7x:2x2x1
jax: 0.10.0
libtpu: 0.0.40
codegen_flags: <defaults>
</compile_context>

<pallas_src>
import functools
import math

import jax
import jax.numpy as jnp
from jax.experimental import pallas as pl
from jax.experimental.pallas import tpu as pltpu


def _flash_attn_kernel(q_ref, kv_ref, o_ref, m_ref, l_ref, acc_ref,
                       *, scale, S, TS, mask_last):
    # q_ref:  (BB, T, D)   kv_ref: (BB, D, TS)   o_ref: (1, BB, T*D)
    # m_ref/l_ref: (BB, T, 1) f32   acc_ref: (BB, T, D) f32
    s_idx = pl.program_id(1)

    @pl.when(s_idx == 0)
    def _init():
        m_ref[...] = jnp.full_like(m_ref, -jnp.inf)
        l_ref[...] = jnp.zeros_like(l_ref)
        acc_ref[...] = jnp.zeros_like(acc_ref)

    q = q_ref[...]
    kv = kv_ref[...]          # one VMEM tile feeds both matmuls (K and V)

    # scores (BB, T, TS): contract channel dim D; canonical MXU form, f32 accumulate.
    s = jnp.einsum("btd,bds->bts", q, kv,
                   preferred_element_type=jnp.float32) * scale

    if mask_last:
        # Padded lanes of the final S tile must not contribute to the softmax.
        col = jax.lax.broadcasted_iota(jnp.int32, s.shape, dimension=2)
        valid = S - s_idx * TS
        s = jnp.where(col < valid, s, -jnp.inf)

    # online softmax update (f32)
    m_prev = m_ref[...]
    m_new = jnp.maximum(m_prev, jnp.max(s, axis=-1, keepdims=True))
    alpha = jnp.exp(m_prev - m_new)
    p = jnp.exp(s - m_new)
    l_ref[...] = alpha * l_ref[...] + jnp.sum(p, axis=-1, keepdims=True)

    # PV (BB, T, D): contract the S lane axis of both operands (trans-B dot, MXU).
    pv = jnp.einsum("bts,bds->btd", p.astype(kv.dtype), kv,
                    preferred_element_type=jnp.float32)
    acc_ref[...] = alpha * acc_ref[...] + pv
    m_ref[...] = m_new

    @pl.when(s_idx == pl.num_programs(1) - 1)
    def _finalize():
        inv_l = pl.reciprocal(l_ref[...], approx=False)   # exact; EUP, effectively free
        o = acc_ref[...] * inv_l
        bb, t, d = acc_ref.shape
        # lane-dense store: one (BB, T*D) slab instead of D(<128)-lane masked rows
        o_ref[...] = o.reshape(1, bb, t * d).astype(o_ref.dtype)


def _pick_tiles(B, T, D, S, q_bytes, kv_bytes, out_bytes,
                vmem_budget=20 * 1024 * 1024, min_batch_steps=4):
    """VMEM-budgeted batch block BB (divisor of B) and S tile TS."""
    TS = S if S <= 512 else 512            # 512-lane kv tiles; full S when small
    per_batch = (2 * D * TS * kv_bytes     # kv block, double-buffered
                 + 2 * T * D * q_bytes     # q block, double-buffered
                 + 2 * T * D * out_bytes   # out block, double-buffered
                 + (T * D + 2 * T) * 4)    # acc/m/l f32 scratch
    bb_cap = max(1, vmem_budget // per_batch)
    target_steps = min(B, min_batch_steps)  # keep >= min(4, B) batch grid steps
    bb = 1
    for cand in range(1, B + 1):
        if B % cand == 0 and cand <= bb_cap and B // cand >= target_steps:
            bb = cand
    return bb, TS


def image_text_stacked_attention(img_feats, exp_feats, *, compute_dtype=None):
    """img_feats: [B, C, H, W] (k = v).   exp_feats: [B, T, D] (q).   Requires D == C."""
    B, C, H, W = img_feats.shape
    Bq, T, D = exp_feats.shape
    assert B == Bq and D == C, "channel dim of img_feats must match hidden dim of exp_feats"
    S = H * W
    out_dtype = exp_feats.dtype

    # free (contiguous) reshape: [B, C, H, W] -> [B, D, S]; no HBM transpose pass
    kv = img_feats.reshape(B, C, S)
    q = exp_feats
    if compute_dtype is not None:
        # memory-bound on kv reads: bf16 halves the binding HBM traffic (v6e/v7x)
        kv = kv.astype(compute_dtype)
        q = q.astype(compute_dtype)

    q_bytes = jnp.dtype(q.dtype).itemsize
    kv_bytes = jnp.dtype(kv.dtype).itemsize
    out_bytes = jnp.dtype(out_dtype).itemsize
    BB, TS = _pick_tiles(B, T, D, S, q_bytes, kv_bytes, out_bytes)
    n_b, n_s = B // BB, pl.cdiv(S, TS)

    kernel = functools.partial(
        _flash_attn_kernel,
        scale=1.0 / math.sqrt(D), S=S, TS=TS, mask_last=(S % TS != 0))

    cost = pl.CostEstimate(
        flops=4 * B * T * S * D,
        transcendentals=B * T * S,
        bytes_accessed=B * D * S * kv_bytes + B * T * D * (q_bytes + out_bytes))

    out = pl.pallas_call(
        kernel,
        out_shape=jax.ShapeDtypeStruct((n_b, BB, T * D), out_dtype),
        grid=(n_b, n_s),
        in_specs=[
            pl.BlockSpec((BB, T, D), lambda b, s: (b, 0, 0)),    # q: resident across S
            pl.BlockSpec((BB, D, TS), lambda b, s: (b, 0, s)),   # kv: streamed over S
        ],
        out_specs=pl.BlockSpec((1, BB, T * D), lambda b, s: (b, 0, 0)),
        scratch_shapes=[
            pltpu.VMEM((BB, T, 1), jnp.float32),   # running max m
            pltpu.VMEM((BB, T, 1), jnp.float32),   # running denominator l
            pltpu.VMEM((BB, T, D), jnp.float32),   # un-normalized accumulator
        ],
        compiler_params=pltpu.CompilerParams(
            dimension_semantics=("parallel", "arbitrary"),
            vmem_limit_bytes=32 * 1024 * 1024),
        cost_estimate=cost,
    )(q, kv)
    return out.reshape(B, T, D)


def _reference(img_feats_nchw, exp_feats):
    B, C, H, W = img_feats_nchw.shape
    kv = jnp.transpose(img_feats_nchw, (0, 2, 3, 1)).reshape(B, H * W, C)
    s = jnp.einsum("btd,bsd->bts", exp_feats, kv) / math.sqrt(C)
    p = jax.nn.softmax(s, axis=-1)
    return jnp.einsum("bts,bsd->btd", p, kv)


if __name__ == "__main__":
    key = jax.random.PRNGKey(0)
    k1, k2 = jax.random.split(key)

    B, C, H, W = 2, 32, 16, 16   # image features (NCHW, as a conv backbone would emit)
    T = 8                        # text sequence length; hidden dim D == C

    img_feats = jax.random.normal(k1, (B, C, H, W), dtype=jnp.float32)
    exp_feats = jax.random.normal(k2, (B, T, C), dtype=jnp.float32)

    ref = _reference(img_feats, exp_feats)

    # f32 path (exact reciprocal, f32 softmax/accum) -> tight tolerance
    out = image_text_stacked_attention(img_feats, exp_feats)
    out = jax.block_until_ready(out)
    assert out.shape == (B, T, C)
    assert jnp.max(jnp.abs(out - ref)) < 1e-3, "mismatch vs. pure-JAX reference (f32)"

    # bf16 q/kv path (halves the binding kv HBM traffic on v6e/v7x)
    out_bf16 = image_text_stacked_attention(img_feats, exp_feats,
                                            compute_dtype=jnp.bfloat16)
    out_bf16 = jax.block_until_ready(out_bf16)
    assert jnp.max(jnp.abs(out_bf16.astype(jnp.float32) - ref)) < 1e-1, \
        "mismatch vs. pure-JAX reference (bf16 inputs)"

    print("KERNEL_OK")
</pallas_src>

<mosaic_0001>
module attributes {stable_mosaic.version = 11 : i64} {
  func.func @_flash_attn_kernel(%arg0: i32, %arg1: i32, %arg2: memref<1x8x32xf32, #tpu.memory_space<vmem>>, %arg3: memref<1x32x256xf32, #tpu.memory_space<vmem>>, %arg4: memref<1x1x256xf32, #tpu.memory_space<vmem>>, %arg5: memref<1x8x1xf32, #tpu.memory_space<vmem>>, %arg6: memref<1x8x1xf32, #tpu.memory_space<vmem>>, %arg7: memref<1x8x32xf32, #tpu.memory_space<vmem>>) attributes {dimension_semantics = [#tpu.dimension_semantics<parallel>, #tpu.dimension_semantics<arbitrary>], iteration_bounds = array<i64: 2, 1>, scalar_prefetch = 0 : i64, scratch_operands = 3 : i64, tpu.core_type = #tpu.core_type<tc>, window_params = [{transform_indices = @transform_0, window_bounds = array<i64: 1, 8, 32>}, {transform_indices = @transform_1, window_bounds = array<i64: 1, 32, 256>}, {transform_indices = @transform_2, window_bounds = array<i64: 1, 1, 256>}]} {
    %c0_i32 = arith.constant 0 : i32
    %0 = arith.cmpi eq, %arg1, %c0_i32 : i32
    %1 = arith.extui %0 : i1 to i32
    %c0_i32_0 = arith.constant 0 : i32
    %2 = arith.cmpi ne, %1, %c0_i32_0 : i32
    scf.if %2 {
      %cst_30 = arith.constant 0xFF800000 : f32
      %33 = vector.broadcast %cst_30 : f32 to vector<1x8x1xf32>
      %c0_31 = arith.constant 0 : index
      %c0_32 = arith.constant 0 : index
      %c0_33 = arith.constant 0 : index
      %34 = vector.load %arg5[%c0_31, %c0_32, %c0_33] : memref<1x8x1xf32, #tpu.memory_space<vmem>>, vector<1x8x1xf32>
      tpu.vector_store %arg5[%c0_31, %c0_32, %c0_33], %33 {strides = array<i32>} : memref<1x8x1xf32, #tpu.memory_space<vmem>>, vector<1x8x1xf32>,
      %cst_34 = arith.constant 0.000000e+00 : f32
      %35 = vector.broadcast %cst_34 : f32 to vector<1x8x1xf32>
      %c0_35 = arith.constant 0 : index
      %c0_36 = arith.constant 0 : index
      %c0_37 = arith.constant 0 : index
      %36 = vector.load %arg6[%c0_35, %c0_36, %c0_37] : memref<1x8x1xf32, #tpu.memory_space<vmem>>, vector<1x8x1xf32>
      tpu.vector_store %arg6[%c0_35, %c0_36, %c0_37], %35 {strides = array<i32>} : memref<1x8x1xf32, #tpu.memory_space<vmem>>, vector<1x8x1xf32>,
      %cst_38 = arith.constant 0.000000e+00 : f32
      %37 = vector.broadcast %cst_38 : f32 to vector<1x8x32xf32>
      %c0_39 = arith.constant 0 : index
      %c0_40 = arith.constant 0 : index
      %c0_41 = arith.constant 0 : index
      %38 = vector.load %arg7[%c0_39, %c0_40, %c0_41] : memref<1x8x32xf32, #tpu.memory_space<vmem>>, vector<1x8x32xf32>
      tpu.vector_store %arg7[%c0_39, %c0_40, %c0_41], %37 {strides = array<i32>} : memref<1x8x32xf32, #tpu.memory_space<vmem>>, vector<1x8x32xf32>,
    } else {
    }
    %c0 = arith.constant 0 : index
    %c0_1 = arith.constant 0 : index
    %c0_2 = arith.constant 0 : index
    %3 = vector.load %arg2[%c0, %c0_1, %c0_2] : memref<1x8x32xf32, #tpu.memory_space<vmem>>, vector<1x8x32xf32>
    %c0_3 = arith.constant 0 : index
    %c0_4 = arith.constant 0 : index
    %c0_5 = arith.constant 0 : index
    %4 = vector.load %arg3[%c0_3, %c0_4, %c0_5] : memref<1x32x256xf32, #tpu.memory_space<vmem>>, vector<1x32x256xf32>
    "tpu.trace_start"() <{level = 10 : i32, message = "btd,bds->bts"}> : () -> ()
    %cst = arith.constant dense<0.000000e+00> : vector<1x8x256xf32>
    %5 = tpu.matmul %3, %4, %cst {dimension_numbers = #tpu.dot_dimension_numbers<[2], [1], [1], [2], [0, 0, 0, 1, 1, 2], [0], [0]>} : vector<1x8x32xf32>, vector<1x32x256xf32>, vector<1x8x256xf32> -> vector<1x8x256xf32>
    "tpu.trace_stop"() : () -> ()
    %cst_6 = arith.constant 0.176776692 : f32
    %6 = vector.broadcast %cst_6 : f32 to vector<1x8x256xf32>
    %7 = arith.mulf %5, %6 : vector<1x8x256xf32>
    %c0_7 = arith.constant 0 : index
    %c0_8 = arith.constant 0 : index
    %c0_9 = arith.constant 0 : index
    %8 = vector.load %arg5[%c0_7, %c0_8, %c0_9] : memref<1x8x1xf32, #tpu.memory_space<vmem>>, vector<1x8x1xf32>
    %cst_10 = arith.constant dense<0xFF800000> : vector<1x8xf32>
    %9 = vector.multi_reduction <maximumf>, %7, %cst_10 [2] : vector<1x8x256xf32> to vector<1x8xf32>
    %10 = vector.shape_cast %9 : vector<1x8xf32> to vector<1x8x1xf32>
    %11 = arith.maximumf %8, %10 : vector<1x8x1xf32>
    %12 = arith.subf %8, %11 : vector<1x8x1xf32>
    %13 = math.exp %12 : vector<1x8x1xf32>
    %14 = vector.broadcast %11 : vector<1x8x1xf32> to vector<1x8x256xf32>
    %15 = arith.subf %7, %14 : vector<1x8x256xf32>
    %16 = math.exp %15 : vector<1x8x256xf32>
    %c0_11 = arith.constant 0 : index
    %c0_12 = arith.constant 0 : index
    %c0_13 = arith.constant 0 : index
    %17 = vector.load %arg6[%c0_11, %c0_12, %c0_13] : memref<1x8x1xf32, #tpu.memory_space<vmem>>, vector<1x8x1xf32>
    %18 = arith.mulf %13, %17 : vector<1x8x1xf32>
    %cst_14 = arith.constant dense<0.000000e+00> : vector<1x8xf32>
    %19 = vector.multi_reduction <add>, %16, %cst_14 [2] : vector<1x8x256xf32> to vector<1x8xf32>
    %20 = vector.shape_cast %19 : vector<1x8xf32> to vector<1x8x1xf32>
    %21 = arith.addf %18, %20 : vector<1x8x1xf32>
    %c0_15 = arith.constant 0 : index
    %c0_16 = arith.constant 0 : index
    %c0_17 = arith.constant 0 : index
    %22 = vector.load %arg6[%c0_15, %c0_16, %c0_17] : memref<1x8x1xf32, #tpu.memory_space<vmem>>, vector<1x8x1xf32>
    tpu.vector_store %arg6[%c0_15, %c0_16, %c0_17], %21 {strides = array<i32>} : memref<1x8x1xf32, #tpu.memory_space<vmem>>, vector<1x8x1xf32>,
    "tpu.trace_start"() <{level = 10 : i32, message = "bts,bds->btd"}> : () -> ()
    %cst_18 = arith.constant dense<0.000000e+00> : vector<1x8x32xf32>
    %23 = tpu.matmul %16, %4, %cst_18 {dimension_numbers = #tpu.dot_dimension_numbers<[2], [2], [1], [1], [0, 0, 0, 1, 1, 1], [0], [0]>} : vector<1x8x256xf32>, vector<1x32x256xf32>, vector<1x8x32xf32> -> vector<1x8x32xf32>
    "tpu.trace_stop"() : () -> ()
    %c0_19 = arith.constant 0 : index
    %c0_20 = arith.constant 0 : index
    %c0_21 = arith.constant 0 : index
    %24 = vector.load %arg7[%c0_19, %c0_20, %c0_21] : memref<1x8x32xf32, #tpu.memory_space<vmem>>, vector<1x8x32xf32>
    %25 = vector.broadcast %13 : vector<1x8x1xf32> to vector<1x8x32xf32>
    %26 = arith.mulf %25, %24 : vector<1x8x32xf32>
    %27 = arith.addf %26, %23 : vector<1x8x32xf32>
    %c0_22 = arith.constant 0 : index
    %c0_23 = arith.constant 0 : index
    %c0_24 = arith.constant 0 : index
    %28 = vector.load %arg7[%c0_22, %c0_23, %c0_24] : memref<1x8x32xf32, #tpu.memory_space<vmem>>, vector<1x8x32xf32>
    tpu.vector_store %arg7[%c0_22, %c0_23, %c0_24], %27 {strides = array<i32>} : memref<1x8x32xf32, #tpu.memory_space<vmem>>, vector<1x8x32xf32>,
    %c0_25 = arith.constant 0 : index
    %c0_26 = arith.constant 0 : index
    %c0_27 = arith.constant 0 : index
    %29 = vector.load %arg5[%c0_25, %c0_26, %c0_27] : memref<1x8x1xf32, #tpu.memory_space<vmem>>, vector<1x8x1xf32>
    tpu.vector_store %arg5[%c0_25, %c0_26, %c0_27], %11 {strides = array<i32>} : memref<1x8x1xf32, #tpu.memory_space<vmem>>, vector<1x8x1xf32>,
    %c0_i32_28 = arith.constant 0 : i32
    %30 = arith.cmpi eq, %arg1, %c0_i32_28 : i32
    %31 = arith.extui %30 : i1 to i32
    %c0_i32_29 = arith.constant 0 : i32
    %32 = arith.cmpi ne, %31, %c0_i32_29 : i32
    scf.if %32 {
      %c0_30 = arith.constant 0 : index
      %c0_31 = arith.constant 0 : index
      %c0_32 = arith.constant 0 : index
      %33 = vector.load %arg6[%c0_30, %c0_31, %c0_32] : memref<1x8x1xf32, #tpu.memory_space<vmem>>, vector<1x8x1xf32>
      %34 = tpu.reciprocal %33 : vector<1x8x1xf32> -> vector<1x8x1xf32>
      %c0_33 = arith.constant 0 : index
      %c0_34 = arith.constant 0 : index
      %c0_35 = arith.constant 0 : index
      %35 = vector.load %arg7[%c0_33, %c0_34, %c0_35] : memref<1x8x32xf32, #tpu.memory_space<vmem>>, vector<1x8x32xf32>
      %36 = vector.broadcast %34 : vector<1x8x1xf32> to vector<1x8x32xf32>
      %37 = arith.mulf %35, %36 : vector<1x8x32xf32>
      %38 = vector.shape_cast %37 : vector<1x8x32xf32> to vector<1x1x256xf32>
      %c0_36 = arith.constant 0 : index
      %c0_37 = arith.constant 0 : index
      %c0_38 = arith.constant 0 : index
      %39 = vector.load %arg4[%c0_36, %c0_37, %c0_38] : memref<1x1x256xf32, #tpu.memory_space<vmem>>, vector<1x1x256xf32>
      tpu.vector_store %arg4[%c0_36, %c0_37, %c0_38], %38 {strides = array<i32>} : memref<1x1x256xf32, #tpu.memory_space<vmem>>, vector<1x1x256xf32>,
    } else {
    }
    return
  }
  func.func @transform_0(%arg0: i32, %arg1: i32) -> (i32, i32, i32) {
    %c0_i32 = arith.constant 0 : i32
    %c0_i32_0 = arith.constant 0 : i32
    %c0_i32_1 = arith.constant 0 : i32
    return %arg0, %c0_i32, %c0_i32_0 : i32, i32, i32
  }
  func.func @transform_1(%arg0: i32, %arg1: i32) -> (i32, i32, i32) {
    %c0_i32 = arith.constant 0 : i32
    %c0_i32_0 = arith.constant 0 : i32
    return %arg0, %c0_i32, %arg1 : i32, i32, i32
  }
  func.func @transform_2(%arg0: i32, %arg1: i32) -> (i32, i32, i32) {
    %c0_i32 = arith.constant 0 : i32
    %c0_i32_0 = arith.constant 0 : i32
    %c0_i32_1 = arith.constant 0 : i32
    return %arg0, %c0_i32, %c0_i32_0 : i32, i32, i32
  }
}

</mosaic_0001>

<llo_original>
// kernel: tpu_custom_call.1
$region0: #{tpu_custom_call.1}
  #allocation0 [shape = 'u32[]', space=smem, size = 0x4, offset = 0x4, fixed_abs, tag = 'smem constant byte address 0x4 - core index']
  #allocation1 [shape = 'u32[144,128]{1,0:T(1,128)}', space=vmem, size = 0x12000, scoped, tag = 'internal scratch']
  #allocation2 [shape = 'f32[1,8,1]{2,1,0:T(8,128)}', space=vmem, size = 0x1000, scoped, tag = 'scratch operand']
  #allocation3 [shape = 'f32[1,8,1]{2,1,0:T(8,128)}', space=vmem, size = 0x1000, scoped, tag = 'scratch operand']
  #allocation4 [shape = 'f32[1,8,32]{2,1,0:T(8,128)}', space=vmem, size = 0x1000, scoped, tag = 'scratch operand']
  %s0 = inlined_call_operand.hbm [shape: f32[2,8,32], index: 0, kind: input, shape index: {}]
  %s1 = inlined_call_operand.hbm [shape: f32[2,32,256], index: 1, kind: input, shape index: {}]
  %s2 = inlined_call_operand.hbm [shape: f32[2,1,256], index: 2, kind: output, shape index: {}]
  %s3 = sld [smem:[#allocation0]]
  $region57: #{tpu_custom_call.1} parent=0
    _
  %s5 = ssub.s32 1, %s3
  %s6 = scalar_select 0, %s5, %s3
  $region1: #{tpu_custom_call.1} parent=0
    #allocation5 [shape = 'u8[8192]{0}', space=vmem, size = 0x2000, scoped, tag = 'input window, operand 0']
    #allocation6 [shape = 's32[2]{0}', space=sflag, size = 0x8, scoped, tag = 'scoped memory for tpu_custom_call.1']
    #allocation7 [shape = 's32[2]{0}', space=sflag, size = 0x8, scoped, tag = 'scoped memory for tpu_custom_call.1']
    #allocation8 [shape = 'u8[65536]{0}', space=vmem, size = 0x10000, scoped, tag = 'input window, operand 1']
    #allocation9 [shape = 's32[2]{0}', space=sflag, size = 0x8, scoped, tag = 'scoped memory for tpu_custom_call.1']
    #allocation10 [shape = 'u8[2048]{0}', space=vmem, size = 0x800, scoped, tag = 'output window, operand 0']
    %7 = vsyncpa [#allocation6], 0
    %s8 = scalar_lea.sflag [#allocation6], 1
    %9 = vsyncpa %s8, 0
    %10 = vsyncpa [#allocation9], 0
    %s11 = scalar_lea.sflag [#allocation9], 1
    %12 = vsyncpa %s11, 0
    %13 = vsyncpa [#allocation7], 0
    %s14 = scalar_lea.sflag [#allocation7], 1
    %15 = vsyncpa %s14, 0
    loop: start=0, step=1, limit=4
    $region2: #{tpu_custom_call.1} parent=1 // loop_pre_header
      _
    $region3: #{tpu_custom_call.1} parent=1 // loop_header
      %s17 = sphi 0, %s21
      %p18 = scmp.ge.s32.totalorder %s17, 4
      %s24 = sphi 0, %s36
      %s25 = sphi 0, %s32
      %s26 = sphi 0, %s24
      %s27 = sphi 0, %s25
      %s28 = sphi 0, %s26
      %s29 = sphi 0, %s27
      %s39 = sphi 0, %s41
      %s42 = sphi 0, %s39
      %s43 = sphi 0, %s42
      %s59 = sphi 0, %s43
      %s67 = sphi 0, %s69
      %s70 = sphi 0, %s67
      %s71 = sphi 0, %s70
      %s87 = sphi 0, %s71
      %s93 = sphi 0, %s95
      %s96 = sphi 0, %s93
      %s97 = sphi 0, %s96
      %s113 = sphi 0, %s97
    $region4: #{tpu_custom_call.1} parent=1 // loop_header_branch
      %20 = sbr.rel (%p18) target = $region8
    $region5: #{tpu_custom_call.1} parent=1 // loop_body
      %s22 = ssub.s32 %s17, 1
      %s23 = ssub.s32 %s17, 2
      %s30 = sadd.s32 1, %s25
      %p31 = scmp.ge.s32.totalorder %s30, 1
      %s32 = scalar_select %p31, 0, %s30
      %s33 = sadd.s32 1, %s24
      %s34 = scalar_select %p31, %s33, %s24
      %p35 = scmp.ge.s32.totalorder %s34, 2
      %s36 = scalar_select %p35, 0, %s34
      %s37 = ssub.s32 %s24, %s36
      %p38 = scmp.eq.s32.totalorder %s37, 0
      %s40 = sadd.s32 %s39, 1
      %s41 = scalar_select %p38, %s39, %s40
      %p44 = pneg %p38
      %p45 = scmp.eq.s32.totalorder %s17, 1
      %p46 = por %p44, %p45
      %p47 = scmp.ne.s32.totalorder %s39, %s42
      %p48 = scmp.eq.s32.totalorder %s17, 0
      %p49 = por %p47, %p48
      %p50 = scmp.ne.s32.totalorder %s39, %s42
      %p51 = scmp.eq.s32.totalorder %s22, 1
      %p52 = por %p50, %p51
      %p53 = scmp.ne.s32.totalorder %s42, %s43
      %p54 = scmp.eq.s32.totalorder %s22, 0
      %p55 = por %p53, %p54
      %p56 = scmp.ne.s32.totalorder %s42, %s43
      %p57 = scmp.eq.s32.totalorder %s23, 1
      %p58 = por %p56, %p57
      %p60 = scmp.ne.s32.totalorder %s43, %s59
      %p61 = scmp.eq.s32.totalorder %s23, 0
      %p62 = por %p60, %p61
      %s63 = ssub.s32 %s24, %s36
      %s64 = ssub.s32 %s25, %s32
      %s65 = sor.u32 %s63, %s64
      %p66 = scmp.eq.s32.totalorder %s65, 0
      %s68 = sadd.s32 %s67, 1
      %s69 = scalar_select %p66, %s67, %s68
      %p72 = pneg %p66
      %p73 = scmp.eq.s32.totalorder %s17, 1
      %p74 = por %p72, %p73
      %p75 = scmp.ne.s32.totalorder %s67, %s70
      %p76 = scmp.eq.s32.totalorder %s17, 0
      %p77 = por %p75, %p76
      %p78 = scmp.ne.s32.totalorder %s67, %s70
      %p79 = scmp.eq.s32.totalorder %s22, 1
      %p80 = por %p78, %p79
      %p81 = scmp.ne.s32.totalorder %s70, %s71
      %p82 = scmp.eq.s32.totalorder %s22, 0
      %p83 = por %p81, %p82
      %p84 = scmp.ne.s32.totalorder %s70, %s71
      %p85 = scmp.eq.s32.totalorder %s23, 1
      %p86 = por %p84, %p85
      %p88 = scmp.ne.s32.totalorder %s71, %s87
      %p89 = scmp.eq.s32.totalorder %s23, 0
      %p90 = por %p88, %p89
      %s91 = ssub.s32 %s24, %s36
      %p92 = scmp.eq.s32.totalorder %s91, 0
      %s94 = sadd.s32 %s93, 1
      %s95 = scalar_select %p92, %s93, %s94
      %p98 = pneg %p92
      %p99 = scmp.eq.s32.totalorder %s17, 1
      %p100 = por %p98, %p99
      %p101 = scmp.ne.s32.totalorder %s93, %s96
      %p102 = scmp.eq.s32.totalorder %s17, 0
      %p103 = por %p101, %p102
      %p104 = scmp.ne.s32.totalorder %s93, %s96
      %p105 = scmp.eq.s32.totalorder %s22, 1
      %p106 = por %p104, %p105
      %p107 = scmp.ne.s32.totalorder %s96, %s97
      %p108 = scmp.eq.s32.totalorder %s22, 0
      %p109 = por %p107, %p108
      %p110 = scmp.ne.s32.totalorder %s96, %s97
      %p111 = scmp.eq.s32.totalorder %s23, 1
      %p112 = por %p110, %p111
      %p114 = scmp.ne.s32.totalorder %s97, %s113
      %p115 = scmp.eq.s32.totalorder %s23, 0
      %p116 = por %p114, %p115
      %p117 = scmp.le.s32.totalorder 1, %s17
      %p118 = scmp.lt.s32.totalorder %s17, 3
      %p119 = pnand %p117, %p118
      %p120 = pneg %p119
      // Predicated region
      $region9: #{tpu_custom_call.1} parent=5 // pred_check
        _
      $region10: #{tpu_custom_call.1} parent=5 // pred_check_branch
        %122 = sbr.rel (%p119) target = $region12
      $region11: #{tpu_custom_call.1} parent=5 // pred_region
        %s123 = ssub.s32 %s17, 1
      $region12: #{tpu_custom_call.1} parent=5 // pred_fallthru
        _
      %p124 = scmp.lt.s32.totalorder %s17, 2
      // Predicated region
      $region13: #{tpu_custom_call.1} parent=5 // pred_check
        %p125 = pneg %p124
      $region14: #{tpu_custom_call.1} parent=5 // pred_check_branch
        %127 = sbr.rel (%p125) target = $region16
      $region15: #{tpu_custom_call.1} parent=5 // pred_region
        // Predicated region
        $region17: #{tpu_custom_call.1} parent=15 // pred_check
          %p128 = pneg %p49
        $region18: #{tpu_custom_call.1} parent=15 // pred_check_branch
          %130 = sbr.rel (%p128) target = $region20
        $region19: #{tpu_custom_call.1} parent=15 // pred_region
          %s131 = sand.u32 %s39, 1
          %s132 = scalar_lea.sflag [#allocation6], %s131
          %s133 = sand.u32 %s39, 1
          %s134 = smul.addr %s133, 8
          %s135 = scalar_lea.vmem [#allocation5], %s134
          %s137 = ssub.s32 128, 128
          %138 = vsyncadd %s132, %s137
          %s139 = smul.addr %s24, 128
          %s140 = scalar_lea.hbm %s0, %s139
          %s142 = sshll.u32 %s135, 4
          %s143 = int_to_ptr.vmem [resolvable:$true] %s142
          %145 = dma.hbm_to_vmem [thread:$0]  %s140, 128, %s143, %s132
        $region20: #{tpu_custom_call.1} parent=15 // pred_fallthru
          _
        // Predicated region
        $region21: #{tpu_custom_call.1} parent=15 // pred_check
          %p146 = pneg %p77
        $region22: #{tpu_custom_call.1} parent=15 // pred_check_branch
          %148 = sbr.rel (%p146) target = $region24
        $region23: #{tpu_custom_call.1} parent=15 // pred_region
          %s149 = sand.u32 %s67, 1
          %s150 = scalar_lea.sflag [#allocation9], %s149
          %s151 = sand.u32 %s67, 1
          %s152 = smul.addr %s151, 64
          %s153 = scalar_lea.vmem [#allocation8], %s152
          %s154 = smul.u32 2, %s25
          %s156 = ssub.s32 1024, 1024
          %157 = vsyncadd %s150, %s156
          %s158 = smul.addr %s24, 8
          %s159 = sadd.s32 %s154, %s158
          %s160 = smul.addr %s159, 128
          %s161 = scalar_lea.hbm %s1, %s160
          %s162 = sshll.u32 %s153, 4
          %s163 = int_to_ptr.vmem [resolvable:$true] %s162
          %168 = dma.hbm_to_vmem [thread:$0]  %s161, 1024, %s163, %s150, 256, 256, 16
        $region24: #{tpu_custom_call.1} parent=15 // pred_fallthru
          _
      $region16: #{tpu_custom_call.1} parent=5 // pred_fallthru
        _
      %p169 = scmp.le.s32.totalorder 1, %s17
      %p170 = scmp.lt.s32.totalorder %s17, 3
      %p171 = pnand %p169, %p170
      %p172 = pneg %p171
      // Predicated region
      $region25: #{tpu_custom_call.1} parent=5 // pred_check
        _
      $region26: #{tpu_custom_call.1} parent=5 // pred_check_branch
        %174 = sbr.rel (%p171) target = $region28
      $region27: #{tpu_custom_call.1} parent=5 // pred_region
        %s175 = ssub.s32 %s17, 1
        %s176 = sand.u32 %s42, 1
        %s177 = scalar_lea.sflag [#allocation6], %s176
        %s178 = sand.u32 %s42, 1
        %s179 = smul.addr %s178, 8
        %s180 = scalar_lea.vmem [#allocation5], %s179
        // Predicated region
        $region29: #{tpu_custom_call.1} parent=27 // pred_check
          %p181 = pneg %p55
        $region30: #{tpu_custom_call.1} parent=27 // pred_check_branch
          %183 = sbr.rel (%p181) target = $region32
        $region31: #{tpu_custom_call.1} parent=27 // pred_region
          %184 = dma.done %s177, 128
        $region32: #{tpu_custom_call.1} parent=27 // pred_fallthru
          _
        %s185 = sand.u32 %s70, 1
        %s186 = scalar_lea.sflag [#allocation9], %s185
        %s187 = sand.u32 %s70, 1
        %s188 = smul.addr %s187, 64
        %s189 = scalar_lea.vmem [#allocation8], %s188
        // Predicated region
        $region33: #{tpu_custom_call.1} parent=27 // pred_check
          %p190 = pneg %p83
        $region34: #{tpu_custom_call.1} parent=27 // pred_check_branch
          %192 = sbr.rel (%p190) target = $region36
        $region35: #{tpu_custom_call.1} parent=27 // pred_region
          %193 = dma.done %s186, 1024
        $region36: #{tpu_custom_call.1} parent=27 // pred_fallthru
          _
        %s194 = sand.u32 %s42, 1
        %s195 = scalar_lea.sflag [#allocation6], %s194
        %s196 = sand.u32 %s42, 1
        %s197 = smul.addr %s196, 8
        %s198 = scalar_lea.vmem [#allocation5], %s197
        %p199 = pneg %p55
        %p200 = pneg %p52
        %s201 = sand.u32 %s70, 1
        %s202 = scalar_lea.sflag [#allocation9], %s201
        %s203 = sand.u32 %s70, 1
        %s204 = smul.addr %s203, 64
        %s205 = scalar_lea.vmem [#allocation8], %s204
        %p206 = pneg %p83
        %p207 = pneg %p80
        %p208 = pneg %p109
        %p209 = pneg %p106
        %s210 = sand.u32 %s96, 1
        %s211 = scalar_lea.sflag [#allocation7], %s210
        %s212 = sand.u32 %s96, 1
        %s213 = smul.addr %s212, 2
        %s214 = scalar_lea.vmem [#allocation10], %s213
        %s215 = smul.u32 2, %s27
        %p216 = scmp.eq.s32.totalorder %s27, 0
        // Predicated region
        $region37: #{tpu_custom_call.1} parent=27 // pred_check
          %p217 = pneg %p216
        $region38: #{tpu_custom_call.1} parent=27 // pred_check_branch
          %219 = sbr.rel (%p217) target = $region40
        $region39: #{tpu_custom_call.1} parent=27 // pred_region
          %vm220 = vcmask 7168
          %221 = vst.msk [vmem:[#allocation2] sm:$0xff] %vm220, -inf
          %222 = vst.msk [vmem:[#allocation3] sm:$0xff] %vm220, 0.0
          %vm223 = vcmask 261120
          %224 = vst.msk [vmem:[#allocation4] sm:$0xff] %vm223, 0.0
        $region40: #{tpu_custom_call.1} parent=27 // pred_fallthru
          _
        %v225 = vld [vmem:[%s180] sm:$0xff]
        %v226 = vld [vmem:[%s189] sm:$0xff]
        %v227 = vld [vmem:[%s189 + $0x8] sm:$0xff]
        %v228 = vld [vmem:[%s189 + $0x10] sm:$0xff]
        %v229 = vld [vmem:[%s189 + $0x18] sm:$0xff]
        %v230 = vld [vmem:[%s189 + $0x20] sm:$0xff]
        %v231 = vld [vmem:[%s189 + $0x28] sm:$0xff]
        %v232 = vld [vmem:[%s189 + $0x30] sm:$0xff]
        %v233 = vld [vmem:[%s189 + $0x38] sm:$0xff]
        %vm234 = vcmask 261120
        %v236 = vsel %vm234, %v225, 0
        %238 = vmatprep.subr.mxu0 %v227
        %239 = vmatpush1.msra.mxu0 %v226
        %240 = vmatprep.subr.mxu0 %v229
        %241 = vmatpush1.msra.mxu0 %v228
        %242 = vmatprep.subr.mxu0 %v231
        %243 = vmatpush1.msra.mxu0 %v230
        %244 = vmatprep.subr.mxu0 %v233
        %245 = vmatpush1.msra.mxu0 %v232
        %246 = vmatprep.subr.mxu0 0.0
        %247 = vmatpush1.msra.mxu0 0.0
        %248 = vmatprep.subr.mxu0 0.0
        %249 = vmatpush1.msra.mxu0 0.0
        %250 = vmatprep.subr.mxu0 0.0
        %251 = vmatpush1.msra.mxu0 0.0
        %252 = vmatprep.subr.mxu0 0.0
        %253 = vmatpush1.msra.mxu0 0.0
        %254 = vmatprep.subr.mxu0 0.0
        %255 = vmatpush1.msra.mxu0 0.0
        %256 = vmatprep.subr.mxu0 0.0
        %257 = vmatpush1.msra.mxu0 0.0
        %258 = vmatprep.subr.mxu0 0.0
        %259 = vmatpush1.msra.mxu0 0.0
        %260 = vmatprep.subr.mxu0 0.0
        %261 = vmatpush1.msra.mxu0 0.0
        %262 = vmatprep.subr.mxu0 0.0
        %263 = vmatpush1.msra.mxu0 0.0
        %264 = vmatprep.subr.mxu0 0.0
        %265 = vmatpush1.msra.mxu0 0.0
        %266 = vmatprep.subr.mxu0 0.0
        %267 = vmatpush1.msra.mxu0 0.0
        %268 = vmatprep.subr.mxu0 0.0
        %269 = vmatpush1.msra.mxu0 0.0
        %270 = vmatprep.subr.mxu0 0.0
        %271 = vmatpush1.msra.mxu0 0.0
        %272 = vmatprep.subr.mxu0 0.0
        %273 = vmatpush1.msra.mxu0 0.0
        %274 = vmatprep.subr.mxu0 0.0
        %275 = vmatpush1.msra.mxu0 0.0
        %276 = vmatprep.subr.mxu0 0.0
        %277 = vmatpush1.msra.mxu0 0.0
        %278 = vmatprep.subr.mxu0 0.0
        %279 = vmatpush1.msra.mxu0 0.0
        %280 = vmatprep.subr.mxu0 0.0
        %281 = vmatpush1.msra.mxu0 0.0
        %282 = vmatprep.subr.mxu0 0.0
        %283 = vmatpush1.msra.mxu0 0.0
        %284 = vmatprep.subr.mxu0 0.0
        %285 = vmatpush1.msra.mxu0 0.0
        %286 = vmatprep.subr.mxu0 0.0
        %287 = vmatpush1.msra.mxu0 0.0
        %288 = vmatprep.subr.mxu0 0.0
        %289 = vmatpush1.msra.mxu0 0.0
        %290 = vmatprep.subr.mxu0 0.0
        %291 = vmatpush1.msra.mxu0 0.0
        %292 = vmatprep.subr.mxu0 0.0
        %293 = vmatpush1.msra.mxu0 0.0
        %294 = vmatprep.subr.mxu0 0.0
        %295 = vmatpush1.msra.mxu0 0.0
        %296 = vmatprep.subr.mxu0 0.0
        %297 = vmatpush1.msra.mxu0 0.0
        %298 = vmatprep.subr.mxu0 0.0
        %299 = vmatpush1.msra.mxu0 0.0
        %300 = vmatprep.subr.mxu0 0.0
        %301 = vmatpush1.msra.mxu0 0.0
        %302 = vmatprep.mubr.f32.mxu0 0.0
        %303 = vmatmul.mubr.f32.gmra.mrb[0].mxu0 %v236
        %v304 = vpop.f32.mrb[0].mxu0
        %v305 = vadd.f32 0.0, %v304
        %v306 = vpop.f32.mrb[0].mxu0
        %v307 = vadd.f32 0.0, %v306
        %308 = vdwg.mxu0
        %v309 = vmul.f32 %v305, 0.17677669
        %v310 = vmul.f32 %v307, 0.17677669
        %v311 = vld [vmem:[#allocation2] sm:$0xff]
        %v312 = vmax.f32 %v309, %v310
        %313 = vmax.xlane.f32.xlu0 %v312
        %v314 = vpop.xlane.xlu0 %313
        %v315 = vmax.f32 %v311, %v314
        %v316 = vsub.f32 %v311, %v315
        %v317 = vmul.f32 %v316, 1.442695
        %v318 = vpow.pop %v317
        %320 = vset.pattern.permute.xlu0 0
        %321 = vperm.xlu0 %320, %v315
        %v322 = vpop.permute.xlu0 %321
        %v324 = vsub.f32 %v309, %v322
        %v325 = vsub.f32 %v310, %v322
        %v326 = vmul.f32 %v324, 1.442695
        %v327 = vpow.pop %v326
        %v328 = vmul.f32 %v325, 1.442695
        %v329 = vpow.pop %v328
        %v330 = vld [vmem:[#allocation3] sm:$0xff]
        %v331 = vmul.f32 %v318, %v330
        %v332 = vadd.f32 %v327, %v329
        %333 = vadd.xlane.f32.xlu0 %v332
        %v334 = vpop.xlane.xlu0 %333
        %v335 = vadd.f32 %v331, %v334
        %vm336 = vcmask 7168
        %337 = vst.msk [vmem:[#allocation3] sm:$0xff] %vm336, %v335
        %338 = vmatprep.subr.mxu0 %v227
        %339 = vmatpush1.xpose.msra.mxu0 %v226
        %340 = vmatprep.subr.mxu0 %v229
        %341 = vmatpush1.xpose.msra.mxu0 %v228
        %342 = vmatprep.subr.mxu0 %v231
        %343 = vmatpush1.xpose.msra.mxu0 %v230
        %344 = vmatprep.subr.mxu0 %v233
        %345 = vmatpush1.xpose.msra.mxu0 %v232
        %346 = vmatprep.subr.mxu0 0.0
        %347 = vmatpush1.xpose.msra.mxu0 0.0
        %348 = vmatprep.subr.mxu0 0.0
        %349 = vmatpush1.xpose.msra.mxu0 0.0
        %350 = vmatprep.subr.mxu0 0.0
        %351 = vmatpush1.xpose.msra.mxu0 0.0
        %352 = vmatprep.subr.mxu0 0.0
        %353 = vmatpush1.xpose.msra.mxu0 0.0
        %354 = vmatprep.subr.mxu0 0.0
        %355 = vmatpush1.xpose.msra.mxu0 0.0
        %356 = vmatprep.subr.mxu0 0.0
        %357 = vmatpush1.xpose.msra.mxu0 0.0
        %358 = vmatprep.subr.mxu0 0.0
        %359 = vmatpush1.xpose.msra.mxu0 0.0
        %360 = vmatprep.subr.mxu0 0.0
        %361 = vmatpush1.xpose.msra.mxu0 0.0
        %362 = vmatprep.subr.mxu0 0.0
        %363 = vmatpush1.xpose.msra.mxu0 0.0
        %364 = vmatprep.subr.mxu0 0.0
        %365 = vmatpush1.xpose.msra.mxu0 0.0
        %366 = vmatprep.subr.mxu0 0.0
        %367 = vmatpush1.xpose.msra.mxu0 0.0
        %368 = vmatprep.subr.mxu0 0.0
        %369 = vmatpush1.xpose.msra.mxu0 0.0
        %370 = vmatprep.subr.mxu0 0.0
        %371 = vmatpush1.xpose.msra.mxu0 0.0
        %372 = vmatprep.subr.mxu0 0.0
        %373 = vmatpush1.xpose.msra.mxu0 0.0
        %374 = vmatprep.subr.mxu0 0.0
        %375 = vmatpush1.xpose.msra.mxu0 0.0
        %376 = vmatprep.subr.mxu0 0.0
        %377 = vmatpush1.xpose.msra.mxu0 0.0
        %378 = vmatprep.subr.mxu0 0.0
        %379 = vmatpush1.xpose.msra.mxu0 0.0
        %380 = vmatprep.subr.mxu0 0.0
        %381 = vmatpush1.xpose.msra.mxu0 0.0
        %382 = vmatprep.subr.mxu0 0.0
        %383 = vmatpush1.xpose.msra.mxu0 0.0
        %384 = vmatprep.subr.mxu0 0.0
        %385 = vmatpush1.xpose.msra.mxu0 0.0
        %386 = vmatprep.subr.mxu0 0.0
        %387 = vmatpush1.xpose.msra.mxu0 0.0
        %388 = vmatprep.subr.mxu0 0.0
        %389 = vmatpush1.xpose.msra.mxu0 0.0
        %390 = vmatprep.subr.mxu0 0.0
        %391 = vmatpush1.xpose.msra.mxu0 0.0
        %392 = vmatprep.subr.mxu0 0.0
        %393 = vmatpush1.xpose.msra.mxu0 0.0
        %394 = vmatprep.subr.mxu0 0.0
        %395 = vmatpush1.xpose.msra.mxu0 0.0
        %396 = vmatprep.subr.mxu0 0.0
        %397 = vmatpush1.xpose.msra.mxu0 0.0
        %398 = vmatprep.subr.mxu0 0.0
        %399 = vmatpush1.xpose.msra.mxu0 0.0
        %400 = vmatprep.subr.mxu0 0.0
        %401 = vmatpush1.xpose.msra.mxu0 0.0
        %402 = vmatprep.mubr.f32.mxu0 %v329
        %403 = vmatmul.mubr.f32.gmra.mrb[0].mxu0 %v327
        %v404 = vpop.f32.mrb[0].mxu0
        %v405 = vadd.f32 0.0, %v404
        %v406 = vpop.f32.mrb[0].mxu0
        %407 = vdwg.mxu0
        %v408 = vld [vmem:[#allocation4] sm:$0xff]
        %410 = vset.pattern.permute.xlu0 0
        %411 = vperm.xlu0 %410, %v318
        %v412 = vpop.permute.xlu0 %411
        %v414 = vmul.f32 %v412, %v408
        %v415 = vadd.f32 %v414, %v405
        %416 = vst.msk [vmem:[#allocation4] sm:$0xff] %vm234, %v415
        %417 = vst.msk [vmem:[#allocation2] sm:$0xff] %vm336, %v315
        // Predicated region
        $region41: #{tpu_custom_call.1} parent=27 // pred_check
          %p418 = pneg %p216
        $region42: #{tpu_custom_call.1} parent=27 // pred_check_branch
          %420 = sbr.rel (%p418) target = $region44
        $region43: #{tpu_custom_call.1} parent=27 // pred_region
          %v421 = vld [vmem:[#allocation3] sm:$0xff]
          %v422 = vrcp.pop %v421
          %v423 = vld [vmem:[#allocation4] sm:$0xff]
          %425 = vset.pattern.permute.xlu0 0
          %426 = vperm.xlu0 %425, %v422
          %v427 = vpop.permute.xlu0 %426
          %v429 = vmul.f32 %v423, %v427
          %v430 = vcombine.high %v429, 0.0
          %v432 = vunpack.c.l.s4 1983009808
          %v433 = vunpack.c.0.s8 %v432
          %v434 = vlaneseq
          %v435 = vshrl.u32 %v434, 7
          %v436 = vsub.s32 %v433, %v435
          %v437 = vrot.slane %v429, %v436
          %v439 = vunpack.c.l.s4 1983009808
          %v440 = vunpack.c.0.s8 %v439
          %v441 = vlaneseq
          %v442 = vshrl.u32 %v441, 7
          %v443 = vsub.s32 %v440, %v442
          %v444 = vrot.slane %v430, %v443
          %v445 = vcombine.high %v437, 0.0
          %v447 = vunpack.c.l.s4 1934713408
          %v448 = vunpack.c.0.s8 %v447
          %v449 = vlaneseq
          %v450 = vshrl.u32 %v449, 7
          %v451 = vsub.s32 %v448, %v450
          %v452 = vrot.slane %v437, %v451
          %v454 = vunpack.c.l.s4 1934713408
          %v455 = vunpack.c.0.s8 %v454
          %v456 = vlaneseq
          %v457 = vshrl.u32 %v456, 7
          %v458 = vsub.s32 %v455, %v457
          %v459 = vrot.slane %v445, %v458
          %v460 = vcombine.high %v444, 0.0
          %v462 = vunpack.c.l.s4 1934713408
          %v463 = vunpack.c.0.s8 %v462
          %v464 = vlaneseq
          %v465 = vshrl.u32 %v464, 7
          %v466 = vsub.s32 %v463, %v465
          %v467 = vrot.slane %v444, %v466
          %v469 = vunpack.c.l.s4 1934713408
          %v470 = vunpack.c.0.s8 %v469
          %v471 = vlaneseq
          %v472 = vshrl.u32 %v471, 7
          %v473 = vsub.s32 %v470, %v472
          %v474 = vrot.slane %v460, %v473
          %v475 = vcombine.high %v452, 0.0
          %v476 = vcombine.high %v459, 0.0
          %v477 = vcombine.high %v467, 0.0
          %v478 = vcombine.high %v474, 0.0
          %480 = vrot.lane.b32.xlu0 %v475, 32
          %v481 = vpop.permute.xlu0 %480
          %484 = vrot.lane.b32.xlu0 %v459, 64
          %v485 = vpop.permute.xlu0 %484
          %488 = vrot.lane.b32.xlu0 %v476, 96
          %v489 = vpop.permute.xlu0 %488
          %492 = vrot.lane.b32.xlu0 %v477, 32
          %v493 = vpop.permute.xlu0 %492
          %496 = vrot.lane.b32.xlu0 %v474, 64
          %v497 = vpop.permute.xlu0 %496
          %500 = vrot.lane.b32.xlu0 %v478, 96
          %v501 = vpop.permute.xlu0 %500
          %v503 = vsel %vm234, %v452, %v481
          %vm504 = vcmask 523264
          %v505 = vsel %vm504, %v503, %v485
          %vm506 = vcmask 785408
          %v507 = vsel %vm506, %v505, %v489
          %v508 = vsel %vm234, %v467, %v493
          %v509 = vsel %vm504, %v508, %v497
          %v510 = vsel %vm506, %v509, %v501
          %v513 = vcombine.low %v507, %v510
          %v515 = vunpack.c.l.s4 1966171168
          %v516 = vunpack.c.0.s8 %v515
          %v517 = vlaneseq
          %v518 = vshrl.u32 %v517, 7
          %v519 = vsub.s32 %v516, %v518
          %v520 = vrot.slane %v513, %v519
          %v522 = vunpack.c.l.s4 1966171168
          %v523 = vunpack.c.0.s8 %v522
          %v524 = vlaneseq
          %v525 = vshrl.u32 %v524, 7
          %v526 = vsub.s32 %v523, %v525
          %v527 = vrot.slane %v520, %v526
          %v529 = vlaneseq
          %vm530 = vcmp.ge.s32.totalorder %v529, 0
          %vm531 = vcmp.lt.s32.totalorder %v529, 256
          %vm532 = vmand %vm530, %vm531
          %533 = vst.msk [vmem:[%s214] sm:$0x3] %vm532, %v527
        $region44: #{tpu_custom_call.1} parent=27 // pred_fallthru
          _
        %s534 = sand.u32 %s96, 1
        %s535 = scalar_lea.sflag [#allocation7], %s534
        %s536 = sand.u32 %s96, 1
        %s537 = smul.addr %s536, 2
        %s538 = scalar_lea.vmem [#allocation10], %s537
        // Predicated region
        $region45: #{tpu_custom_call.1} parent=27 // pred_check
          %p539 = pneg %p106
        $region46: #{tpu_custom_call.1} parent=27 // pred_check_branch
          %541 = sbr.rel (%p539) target = $region48
        $region47: #{tpu_custom_call.1} parent=27 // pred_region
          %s543 = ssub.s32 32, 32
          %544 = vsyncadd %s535, %s543
          %s545 = smul.addr %s26, 2
          %s546 = smul.addr %s545, 16
          %s547 = scalar_lea.hbm %s2, %s546
          %s549 = sshll.u32 %s538, 4
          %s550 = int_to_ptr.vmem [resolvable:$true] %s549
          %552 = dma.vmem_to_hbm [thread:$0]  %s550, 32, %s547, %s535
        $region48: #{tpu_custom_call.1} parent=27 // pred_fallthru
          _
      $region28: #{tpu_custom_call.1} parent=5 // pred_fallthru
        _
      %p553 = scmp.le.s32.totalorder 2, %s17
      // Predicated region
      $region49: #{tpu_custom_call.1} parent=5 // pred_check
        %p554 = pneg %p553
      $region50: #{tpu_custom_call.1} parent=5 // pred_check_branch
        %556 = sbr.rel (%p554) target = $region52
      $region51: #{tpu_custom_call.1} parent=5 // pred_region
        %s557 = ssub.s32 %s17, 2
        // Predicated region
        $region53: #{tpu_custom_call.1} parent=51 // pred_check
          %p558 = pneg %p112
        $region54: #{tpu_custom_call.1} parent=51 // pred_check_branch
          %560 = sbr.rel (%p558) target = $region56
        $region55: #{tpu_custom_call.1} parent=51 // pred_region
          %s561 = sand.u32 %s97, 1
          %s562 = scalar_lea.sflag [#allocation7], %s561
          %s563 = sand.u32 %s97, 1
          %s564 = smul.addr %s563, 2
          %s565 = scalar_lea.vmem [#allocation10], %s564
          %566 = dma.done %s562, 32
        $region56: #{tpu_custom_call.1} parent=51 // pred_fallthru
          _
      $region52: #{tpu_custom_call.1} parent=5 // pred_fallthru
        _
    $region6: #{tpu_custom_call.1} parent=1 // loop_footer
      %s21 = sadd.s32 1, %s17
    $region7: #{tpu_custom_call.1} parent=1 // loop_footer_branch
      %16 = sbr.rel target = $region3
    $region8: #{tpu_custom_call.1} parent=1 // loop_exit
      _
    %567 = vsyncpa [#allocation6], 1
    %s568 = scalar_lea.sflag [#allocation6], 1
    %569 = vsyncpa %s568, 1
    %570 = vsyncpa [#allocation9], 1
    %s571 = scalar_lea.sflag [#allocation9], 1
    %572 = vsyncpa %s571, 1
    %573 = vsyncpa [#allocation7], 1
    %s574 = scalar_lea.sflag [#allocation7], 1
    %575 = vsyncpa %s574, 1

</llo_original>
